<compile_context>
chip_gen: v5e
topology: v5e:2x2
jax: 0.10.0
libtpu: 0.0.40
codegen_flags: <defaults>
</compile_context>

<pallas_src>
import functools

import jax
import jax.numpy as jnp
from jax.experimental import pallas as pl
from jax.experimental.pallas import tpu as pltpu


def _round_up(x, m):
    return (x + m - 1) // m * m


# ----------------------------------------------------------------------------
# Kernel 1: fused conv GEMM + BN pass-1 partial statistics.
#   grid = (B, hw_tiles, k_tiles); K is the reduction axis (f32 VMEM acc).
#   Epilogue (last K step): bf16 activation tile + per-tile sum / sumsq rows.
# ----------------------------------------------------------------------------
def _conv_bn_stats_kernel(xc_ref, w_ref, out_ref, part_ref, acc_ref, *, thw, hw):
    j = pl.program_id(1)
    kk = pl.program_id(2)

    @pl.when(kk == 0)
    def _():
        acc_ref[...] = jnp.zeros_like(acc_ref)

    acc_ref[...] += jnp.dot(
        xc_ref[...], w_ref[...], preferred_element_type=jnp.float32
    )

    @pl.when(kk == pl.num_programs(2) - 1)
    def _():
        acc = acc_ref[...]
        out_ref[...] = acc.astype(out_ref.dtype)

        # BN pass-1 partials, computed from the f32 accumulator (not the
        # rounded bf16 store). Padded rows are masked (they are exactly zero
        # anyway since the conv bias is dropped, but keep the guard explicit).
        rows = j * thw + jax.lax.broadcasted_iota(jnp.int32, acc.shape, 0)
        accm = jnp.where(rows < hw, acc, 0.0)
        s = jnp.sum(accm, axis=0, keepdims=True)           # (1, N_pad)
        q = jnp.sum(accm * accm, axis=0, keepdims=True)    # (1, N_pad)
        n = acc.shape[1]
        row16 = jax.lax.broadcasted_iota(jnp.int32, (16, n), 0)
        part_ref[...] = jnp.where(row16 < 8,
                                  jnp.broadcast_to(s, (16, n)),
                                  jnp.broadcast_to(q, (16, n)))


# ----------------------------------------------------------------------------
# Kernel 2: BN apply (y*scale + shift) + in-kernel transpose to channel-major.
# ----------------------------------------------------------------------------
def _bn_apply_transpose_kernel(y_ref, scale_ref, shift_ref, o_ref):
    y = y_ref[...].astype(jnp.float32)                      # (THW, N_pad)
    out = y * scale_ref[...] + shift_ref[...]
    o_ref[...] = out.T                                      # (N_pad, THW), XLU


# ----------------------------------------------------------------------------
# Host-side glue
# ----------------------------------------------------------------------------
def _im2col_nhwc(x_nhwc, k, stride, pad):
    """(kh, kw, c)-flattened overlapping patches via strided slices (no gather)."""
    B, H, W, C = x_nhwc.shape
    xp = jnp.pad(x_nhwc, ((0, 0), (pad, pad), (pad, pad), (0, 0)))
    Ho = (H + 2 * pad - k) // stride + 1
    Wo = (W + 2 * pad - k) // stride + 1
    cols = []
    for dh in range(k):
        for dw in range(k):
            cols.append(jax.lax.slice(
                xp,
                (0, dh, dw, 0),
                (B, dh + (Ho - 1) * stride + 1, dw + (Wo - 1) * stride + 1, C),
                (1, stride, stride, 1)))                    # (B, Ho, Wo, C)
    patches = jnp.stack(cols, axis=3)                       # (B, Ho, Wo, k*k, C)
    return patches.reshape(B, Ho * Wo, k * k * C), Ho, Wo


@functools.partial(jax.jit, static_argnames=("patch_size", "stride"))
def overlap_patch_embed(x_nchw, w_oihw, b, gamma, beta, *, patch_size=7, stride=4):
    """Forward pass of OverlapPatchEmbed. Returns (y_nchw, H_out, W_out)."""
    k = patch_size
    pad = k // 2
    B, C_in, H, W = x_nchw.shape
    N = w_oihw.shape[0]  # embed_dim
    eps = 1e-5

    # TODO(synk): running_mean / running_var momentum updates (module state
    # mutation) are not modeled; only the training-mode forward output is
    # reproduced. (If they are added, the conv bias must be reintroduced.)
    del b  # exactly cancelled by training-mode BN mean subtraction (dead work)

    # im2col in bf16 (halves HBM traffic of the inflated patch buffer).
    x_nhwc = jnp.transpose(x_nchw, (0, 2, 3, 1)).astype(jnp.bfloat16)
    xc3, Ho, Wo = _im2col_nhwc(x_nhwc, k, stride, pad)      # (B, Hw, K) bf16
    Hw = Ho * Wo
    K = xc3.shape[-1]

    # ---- tiling: lane-dense channel dim; 128-aligned per-batch row tiles ----
    N_pad = _round_up(N, 128)
    THW = 512 if Hw >= 512 else _round_up(Hw, 128)
    Hw_pad = _round_up(Hw, THW)
    hw_tiles = Hw_pad // THW

    if K <= 1024:
        TK, K_pad = K, K            # block last dim == full array dim: no K pad
    else:
        TK = 512
        K_pad = _round_up(K, TK)
    k_tiles = K_pad // TK

    if Hw_pad != Hw or K_pad != K:
        xc3 = jnp.pad(xc3, ((0, 0), (0, Hw_pad - Hw), (0, K_pad - K)))

    # Flatten conv weight to match (kh, kw, c) patch ordering; zero-pad K/N.
    w_mat = jnp.transpose(w_oihw, (2, 3, 1, 0)).reshape(K, N)
    w_mat = jnp.pad(w_mat, ((0, K_pad - K), (0, N_pad - N))).astype(jnp.bfloat16)
    # gamma/beta zero-padded: padded lanes end up with scale = shift = 0.
    gamma_p = jnp.pad(gamma.astype(jnp.float32), (0, N_pad - N))
    beta_p = jnp.pad(beta.astype(jnp.float32), (0, N_pad - N))

    # ---- Kernel 1: conv GEMM + BN pass-1 partials (single pass over data) ----
    conv_bf16, partials = pl.pallas_call(
        functools.partial(_conv_bn_stats_kernel, thw=THW, hw=Hw),
        out_shape=(
            jax.ShapeDtypeStruct((B, Hw_pad, N_pad), jnp.bfloat16),
            jax.ShapeDtypeStruct((B, hw_tiles * 16, N_pad), jnp.float32),
        ),
        grid=(B, hw_tiles, k_tiles),
        in_specs=[
            pl.BlockSpec((None, THW, TK), lambda b_, j, kk: (b_, j, kk)),
            pl.BlockSpec((TK, N_pad), lambda b_, j, kk: (kk, 0)),
        ],
        out_specs=(
            pl.BlockSpec((None, THW, N_pad), lambda b_, j, kk: (b_, j, 0)),
            pl.BlockSpec((None, 16, N_pad), lambda b_, j, kk: (b_, j, 0)),
        ),
        scratch_shapes=[pltpu.VMEM((THW, N_pad), jnp.float32)],
        compiler_params=pltpu.CompilerParams(
            dimension_semantics=("parallel", "parallel", "arbitrary"),
            vmem_limit_bytes=32 * 1024 * 1024),
    )(xc3, w_mat)

    # ---- finalize BN stats -> fused scale/shift (tiny reduction, plain jnp) ----
    parts = partials.reshape(B, hw_tiles, 16, N_pad)
    sum_c = jnp.sum(parts[:, :, 0, :], axis=(0, 1))         # per-channel sum
    sq_c = jnp.sum(parts[:, :, 8, :], axis=(0, 1))          # per-channel sumsq
    inv_m = 1.0 / float(B * Hw)
    mean = sum_c * inv_m
    var = jnp.maximum(sq_c * inv_m - mean * mean, 0.0)      # biased variance
    scale = gamma_p * jax.lax.rsqrt(var + eps)
    shift = beta_p - mean * scale
    scale = scale.reshape(1, N_pad)
    shift = shift.reshape(1, N_pad)

    # ---- Kernel 2: BN apply + in-kernel transpose to (B, C, Ho*Wo) ----
    y_cm = pl.pallas_call(
        _bn_apply_transpose_kernel,
        out_shape=jax.ShapeDtypeStruct((B, N_pad, Hw_pad), jnp.float32),
        grid=(B, hw_tiles),
        in_specs=[
            pl.BlockSpec((None, THW, N_pad), lambda b_, j: (b_, j, 0)),
            pl.BlockSpec((1, N_pad), lambda b_, j: (0, 0)),
            pl.BlockSpec((1, N_pad), lambda b_, j: (0, 0)),
        ],
        out_specs=pl.BlockSpec((None, N_pad, THW), lambda b_, j: (b_, 0, j)),
        compiler_params=pltpu.CompilerParams(
            dimension_semantics=("parallel", "parallel"),
            vmem_limit_bytes=32 * 1024 * 1024),
    )(conv_bf16, scale, shift)

    # Channel-major already: just strip padding and split Ho*Wo -> (Ho, Wo).
    y_nchw = y_cm[:, :N, :Hw].reshape(B, N, Ho, Wo)
    return y_nchw, Ho, Wo


# ----------------------------------------------------------------------------
# Pure-JAX reference (for correctness check)
# ----------------------------------------------------------------------------
def reference(x_nchw, w_oihw, b, gamma, beta, patch_size=7, stride=4):
    pad = patch_size // 2
    y = jax.lax.conv_general_dilated(
        x_nchw.astype(jnp.float32), w_oihw.astype(jnp.float32),
        window_strides=(stride, stride),
        padding=[(pad, pad), (pad, pad)],
        dimension_numbers=("NCHW", "OIHW", "NCHW"),
    ) + b.reshape(1, -1, 1, 1)
    mean = jnp.mean(y, axis=(0, 2, 3), keepdims=True)
    var = jnp.mean((y - mean) ** 2, axis=(0, 2, 3), keepdims=True)  # biased
    y = (y - mean) * jax.lax.rsqrt(var + 1e-5)
    y = y * gamma.reshape(1, -1, 1, 1) + beta.reshape(1, -1, 1, 1)
    return y, y.shape[2], y.shape[3]


if __name__ == "__main__":
    # Small shapes consistent with the module: B=2, in_ch=4, 16x16, embed_dim=32.
    B, C_in, H, W = 2, 4, 16, 16
    embed_dim, patch_size, stride = 32, 7, 4

    key = jax.random.PRNGKey(0)
    kx, kw, kb, kg, kbeta = jax.random.split(key, 5)
    x = jax.random.normal(kx, (B, C_in, H, W), jnp.float32)
    w = 0.05 * jax.random.normal(kw, (embed_dim, C_in, patch_size, patch_size), jnp.float32)
    b = 0.05 * jax.random.normal(kb, (embed_dim,), jnp.float32)
    gamma = 1.0 + 0.1 * jax.random.normal(kg, (embed_dim,), jnp.float32)
    beta = 0.1 * jax.random.normal(kbeta, (embed_dim,), jnp.float32)

    y, Ho, Wo = overlap_patch_embed(
        x, w, b, gamma, beta, patch_size=patch_size, stride=stride
    )
    y = jax.block_until_ready(y)

    y_ref, Ho_ref, Wo_ref = reference(x, w, b, gamma, beta, patch_size, stride)
    assert (Ho, Wo) == (Ho_ref, Wo_ref), (Ho, Wo, Ho_ref, Wo_ref)
    assert y.shape == y_ref.shape == (B, embed_dim, Ho, Wo)
    # bf16 MXU inputs + bf16 conv intermediate -> slightly looser tolerance.
    assert jnp.allclose(y, y_ref, atol=3e-2, rtol=3e-2), float(jnp.max(jnp.abs(y - y_ref)))

    print("KERNEL_OK")
</pallas_src>

<mosaic_0001>
module attributes {stable_mosaic.version = 11 : i64} {
  func.func @_conv_bn_stats_kernel(%arg0: i32, %arg1: i32, %arg2: i32, %arg3: memref<1x128x196xbf16, #tpu.memory_space<vmem>>, %arg4: memref<196x128xbf16, #tpu.memory_space<vmem>>, %arg5: memref<1x128x128xbf16, #tpu.memory_space<vmem>>, %arg6: memref<1x16x128xf32, #tpu.memory_space<vmem>>, %arg7: memref<128x128xf32, #tpu.memory_space<vmem>>) attributes {dimension_semantics = [#tpu.dimension_semantics<parallel>, #tpu.dimension_semantics<parallel>, #tpu.dimension_semantics<arbitrary>], iteration_bounds = array<i64: 2, 1, 1>, scalar_prefetch = 0 : i64, scratch_operands = 1 : i64, tpu.core_type = #tpu.core_type<tc>, window_params = [{transform_indices = @transform_0, window_bounds = array<i64: 1, 128, 196>}, {transform_indices = @transform_1, window_bounds = array<i64: 196, 128>}, {transform_indices = @transform_2, window_bounds = array<i64: 1, 128, 128>}, {transform_indices = @transform_3, window_bounds = array<i64: 1, 16, 128>}]} {
    %c0_i32 = arith.constant 0 : i32
    %0 = arith.cmpi eq, %arg2, %c0_i32 : i32
    %1 = arith.extui %0 : i1 to i32
    %c0_i32_0 = arith.constant 0 : i32
    %2 = arith.cmpi ne, %1, %c0_i32_0 : i32
    scf.if %2 {
      %cst_11 = arith.constant 0.000000e+00 : f32
      %13 = vector.broadcast %cst_11 : f32 to vector<128x128xf32>
      %c0_12 = arith.constant 0 : index
      %c0_13 = arith.constant 0 : index
      %14 = vector.load %arg7[%c0_12, %c0_13] : memref<128x128xf32, #tpu.memory_space<vmem>>, vector<128x128xf32>
      tpu.vector_store %arg7[%c0_12, %c0_13], %13 {strides = array<i32>} : memref<128x128xf32, #tpu.memory_space<vmem>>, vector<128x128xf32>,
    } else {
    }
    %c0 = arith.constant 0 : index
    %c0_1 = arith.constant 0 : index
    %3 = vector.load %arg7[%c0, %c0_1] : memref<128x128xf32, #tpu.memory_space<vmem>>, vector<128x128xf32>
    %c0_2 = arith.constant 0 : index
    %c0_3 = arith.constant 0 : index
    %c0_4 = arith.constant 0 : index
    %4 = vector.load %arg3[%c0_2, %c0_3, %c0_4] : memref<1x128x196xbf16, #tpu.memory_space<vmem>>, vector<1x128x196xbf16>
    %5 = vector.shape_cast %4 : vector<1x128x196xbf16> to vector<128x196xbf16>
    %c0_5 = arith.constant 0 : index
    %c0_6 = arith.constant 0 : index
    %6 = vector.load %arg4[%c0_5, %c0_6] : memref<196x128xbf16, #tpu.memory_space<vmem>>, vector<196x128xbf16>
    %cst = arith.constant dense<0.000000e+00> : vector<128x128xf32>
    %7 = tpu.matmul %5, %6, %cst {dimension_numbers = #tpu.dot_dimension_numbers<[1], [0], [0], [1], [0, 0, 1, 1], [], []>} : vector<128x196xbf16>, vector<196x128xbf16>, vector<128x128xf32> -> vector<128x128xf32>
    %8 = arith.addf %3, %7 : vector<128x128xf32>
    %c0_7 = arith.constant 0 : index
    %c0_8 = arith.constant 0 : index
    %9 = vector.load %arg7[%c0_7, %c0_8] : memref<128x128xf32, #tpu.memory_space<vmem>>, vector<128x128xf32>
    tpu.vector_store %arg7[%c0_7, %c0_8], %8 {strides = array<i32>} : memref<128x128xf32, #tpu.memory_space<vmem>>, vector<128x128xf32>,
    %c0_i32_9 = arith.constant 0 : i32
    %10 = arith.cmpi eq, %arg2, %c0_i32_9 : i32
    %11 = arith.extui %10 : i1 to i32
    %c0_i32_10 = arith.constant 0 : i32
    %12 = arith.cmpi ne, %11, %c0_i32_10 : i32
    scf.if %12 {
      %c0_11 = arith.constant 0 : index
      %c0_12 = arith.constant 0 : index
      %13 = vector.load %arg7[%c0_11, %c0_12] : memref<128x128xf32, #tpu.memory_space<vmem>>, vector<128x128xf32>
      %14 = arith.truncf %13 : vector<128x128xf32> to vector<128x128xbf16>
      %c0_13 = arith.constant 0 : index
      %c0_14 = arith.constant 0 : index
      %c0_15 = arith.constant 0 : index
      %15 = vector.load %arg5[%c0_13, %c0_14, %c0_15] : memref<1x128x128xbf16, #tpu.memory_space<vmem>>, vector<1x128x128xbf16>
      %16 = vector.shape_cast %15 : vector<1x128x128xbf16> to vector<128x128xbf16>
      %17 = vector.shape_cast %14 : vector<128x128xbf16> to vector<1x128x128xbf16>
      tpu.vector_store %arg5[%c0_13, %c0_14, %c0_15], %17 {strides = array<i32>} : memref<1x128x128xbf16, #tpu.memory_space<vmem>>, vector<1x128x128xbf16>,
      %c128_i32 = arith.constant 128 : i32
      %18 = arith.muli %arg1, %c128_i32 : i32
      %19 = tpu.iota {dimensions = array<i32: 0>} : vector<128x128xi32>
      %20 = vector.broadcast %18 : i32 to vector<128x128xi32>
      %21 = arith.addi %20, %19 : vector<128x128xi32>
      %c16_i32 = arith.constant 16 : i32
      %22 = vector.broadcast %c16_i32 : i32 to vector<128x128xi32>
      %23 = arith.cmpi slt, %21, %22 : vector<128x128xi32>
      %cst_16 = arith.constant 0.000000e+00 : f32
      %24 = vector.broadcast %cst_16 : f32 to vector<128x128xf32>
      %25 = arith.select %23, %13, %24 : vector<128x128xi1>, vector<128x128xf32>
      %cst_17 = arith.constant dense<0.000000e+00> : vector<128xf32>
      %26 = vector.multi_reduction <add>, %25, %cst_17 [0] : vector<128x128xf32> to vector<128xf32>
      %27 = vector.shape_cast %26 : vector<128xf32> to vector<1x128xf32>
      %28 = arith.mulf %25, %25 : vector<128x128xf32>
      %cst_18 = arith.constant dense<0.000000e+00> : vector<128xf32>
      %29 = vector.multi_reduction <add>, %28, %cst_18 [0] : vector<128x128xf32> to vector<128xf32>
      %30 = vector.shape_cast %29 : vector<128xf32> to vector<1x128xf32>
      %31 = tpu.iota {dimensions = array<i32: 0>} : vector<16x128xi32>
      %c8_i32 = arith.constant 8 : i32
      %32 = vector.broadcast %c8_i32 : i32 to vector<16x128xi32>
      %33 = arith.cmpi slt, %31, %32 : vector<16x128xi32>
      %34 = vector.shape_cast %27 : vector<1x128xf32> to vector<1x128xf32>
      %35 = vector.broadcast %34 : vector<1x128xf32> to vector<16x128xf32>
      %36 = vector.shape_cast %30 : vector<1x128xf32> to vector<1x128xf32>
      %37 = vector.broadcast %36 : vector<1x128xf32> to vector<16x128xf32>
      %38 = arith.select %33, %35, %37 : vector<16x128xi1>, vector<16x128xf32>
      %c0_19 = arith.constant 0 : index
      %c0_20 = arith.constant 0 : index
      %c0_21 = arith.constant 0 : index
      %39 = vector.load %arg6[%c0_19, %c0_20, %c0_21] : memref<1x16x128xf32, #tpu.memory_space<vmem>>, vector<1x16x128xf32>
      %40 = vector.shape_cast %39 : vector<1x16x128xf32> to vector<16x128xf32>
      %41 = vector.shape_cast %38 : vector<16x128xf32> to vector<1x16x128xf32>
      tpu.vector_store %arg6[%c0_19, %c0_20, %c0_21], %41 {strides = array<i32>} : memref<1x16x128xf32, #tpu.memory_space<vmem>>, vector<1x16x128xf32>,
    } else {
    }
    return
  }
  func.func @transform_0(%arg0: i32, %arg1: i32, %arg2: i32) -> (i32, i32, i32) {
    %c0_i32 = arith.constant 0 : i32
    return %arg0, %arg1, %arg2 : i32, i32, i32
  }
  func.func @transform_1(%arg0: i32, %arg1: i32, %arg2: i32) -> (i32, i32) {
    %c0_i32 = arith.constant 0 : i32
    %c0_i32_0 = arith.constant 0 : i32
    return %arg2, %c0_i32 : i32, i32
  }
  func.func @transform_2(%arg0: i32, %arg1: i32, %arg2: i32) -> (i32, i32, i32) {
    %c0_i32 = arith.constant 0 : i32
    %c0_i32_0 = arith.constant 0 : i32
    return %arg0, %arg1, %c0_i32 : i32, i32, i32
  }
  func.func @transform_3(%arg0: i32, %arg1: i32, %arg2: i32) -> (i32, i32, i32) {
    %c0_i32 = arith.constant 0 : i32
    %c0_i32_0 = arith.constant 0 : i32
    return %arg0, %arg1, %c0_i32 : i32, i32, i32
  }
}

module attributes {stable_mosaic.version = 11 : i64} {
  func.func @_bn_apply_transpose_kernel(%arg0: i32, %arg1: i32, %arg2: memref<1x128x128xbf16, #tpu.memory_space<vmem>>, %arg3: memref<1x128xf32, #tpu.memory_space<vmem>>, %arg4: memref<1x128xf32, #tpu.memory_space<vmem>>, %arg5: memref<1x128x128xf32, #tpu.memory_space<vmem>>) attributes {dimension_semantics = [#tpu.dimension_semantics<parallel>, #tpu.dimension_semantics<parallel>], iteration_bounds = array<i64: 2, 1>, scalar_prefetch = 0 : i64, scratch_operands = 0 : i64, tpu.core_type = #tpu.core_type<tc>, window_params = [{transform_indices = @transform_0, window_bounds = array<i64: 1, 128, 128>}, {pipeline_mode = #tpu.pipeline_mode<synchronous>, transform_indices = @transform_1, window_bounds = array<i64: 1, 128>}, {pipeline_mode = #tpu.pipeline_mode<synchronous>, transform_indices = @transform_2, window_bounds = array<i64: 1, 128>}, {transform_indices = @transform_3, window_bounds = array<i64: 1, 128, 128>}]} {
    %c0 = arith.constant 0 : index
    %c0_0 = arith.constant 0 : index
    %c0_1 = arith.constant 0 : index
    %0 = vector.load %arg2[%c0, %c0_0, %c0_1] : memref<1x128x128xbf16, #tpu.memory_space<vmem>>, vector<1x128x128xbf16>
    %1 = vector.shape_cast %0 : vector<1x128x128xbf16> to vector<128x128xbf16>
    %2 = arith.extf %1 : vector<128x128xbf16> to vector<128x128xf32>
    %c0_2 = arith.constant 0 : index
    %c0_3 = arith.constant 0 : index
    %3 = vector.load %arg3[%c0_2, %c0_3] : memref<1x128xf32, #tpu.memory_space<vmem>>, vector<1x128xf32>
    %4 = vector.broadcast %3 : vector<1x128xf32> to vector<128x128xf32>
    %5 = arith.mulf %2, %4 : vector<128x128xf32>
    %c0_4 = arith.constant 0 : index
    %c0_5 = arith.constant 0 : index
    %6 = vector.load %arg4[%c0_4, %c0_5] : memref<1x128xf32, #tpu.memory_space<vmem>>, vector<1x128xf32>
    %7 = vector.broadcast %6 : vector<1x128xf32> to vector<128x128xf32>
    %8 = arith.addf %5, %7 : vector<128x128xf32>
    %9 = tpu.transpose %8, [1, 0] : vector<128x128xf32> -> vector<128x128xf32>
    %c0_6 = arith.constant 0 : index
    %c0_7 = arith.constant 0 : index
    %c0_8 = arith.constant 0 : index
    %10 = vector.load %arg5[%c0_6, %c0_7, %c0_8] : memref<1x128x128xf32, #tpu.memory_space<vmem>>, vector<1x128x128xf32>
    %11 = vector.shape_cast %10 : vector<1x128x128xf32> to vector<128x128xf32>
    %12 = vector.shape_cast %9 : vector<128x128xf32> to vector<1x128x128xf32>
    tpu.vector_store %arg5[%c0_6, %c0_7, %c0_8], %12 {strides = array<i32>} : memref<1x128x128xf32, #tpu.memory_space<vmem>>, vector<1x128x128xf32>,
    return
  }
  func.func @transform_0(%arg0: i32, %arg1: i32) -> (i32, i32, i32) {
    %c0_i32 = arith.constant 0 : i32
    %c0_i32_0 = arith.constant 0 : i32
    return %arg0, %arg1, %c0_i32 : i32, i32, i32
  }
  func.func @transform_1(%arg0: i32, %arg1: i32) -> (i32, i32) {
    %c0_i32 = arith.constant 0 : i32
    %c0_i32_0 = arith.constant 0 : i32
    %c0_i32_1 = arith.constant 0 : i32
    return %c0_i32, %c0_i32_0 : i32, i32
  }
  func.func @transform_2(%arg0: i32, %arg1: i32) -> (i32, i32) {
    %c0_i32 = arith.constant 0 : i32
    %c0_i32_0 = arith.constant 0 : i32
    %c0_i32_1 = arith.constant 0 : i32
    return %c0_i32, %c0_i32_0 : i32, i32
  }
  func.func @transform_3(%arg0: i32, %arg1: i32) -> (i32, i32, i32) {
    %c0_i32 = arith.constant 0 : i32
    %c0_i32_0 = arith.constant 0 : i32
    return %arg0, %c0_i32, %arg1 : i32, i32, i32
  }
}

</mosaic_0001>

<llo_original>
// kernel: overlap_patch_embed.3
$region0: #{overlap_patch_embed.3}
  #allocation0 [shape = 'u32[]', space=smem, size = 0x4, offset = 0x4, fixed_abs, tag = 'smem constant byte address 0x4 - core index']
  #allocation1 [shape = 'u32[72,128]{1,0:T(1,128)}', space=vmem, size = 0x9000, scoped, tag = 'internal scratch']
  %s0 = inlined_call_operand.vmem [shape: bf16[2,128,128], index: 0, kind: input, shape index: {}]
  %s1 = inlined_call_operand.vmem [shape: f32[1,128], index: 1, kind: input, shape index: {}]
  %s2 = inlined_call_operand.vmem [shape: f32[1,128], index: 2, kind: input, shape index: {}]
  %s3 = inlined_call_operand.vmem [shape: f32[2,128,128], index: 3, kind: output, shape index: {}]
  %s4 = sld [smem:[#allocation0]]
  $region45: #{overlap_patch_embed.3} parent=0
    _
  %s6 = ssub.s32 1, %s4
  %s7 = scalar_select 0, %s6, %s4
  loop: start=0, step=1, limit=4
  $region2: #{overlap_patch_embed.3} parent=0 // loop_pre_header
    _
  $region3: #{overlap_patch_embed.3} parent=0 // loop_header
    %s9 = sphi 0, %s13
    %p10 = scmp.ge.s32.totalorder %s9, 4
    %s16 = sphi 0, %s28
    %s17 = sphi 0, %s24
    %s18 = sphi 0, %s16
    %s19 = sphi 0, %s17
    %s20 = sphi 0, %s18
    %s21 = sphi 0, %s19
    %s33 = sphi 0, %s35
    %s36 = sphi 0, %s33
    %s37 = sphi 0, %s36
    %s53 = sphi 0, %s37
    %s57 = sphi 0, %s57
    %s59 = sphi 0, %s57
    %s60 = sphi 0, %s59
    %s74 = sphi 0, %s60
    %s78 = sphi 0, %s78
    %s80 = sphi 0, %s78
    %s81 = sphi 0, %s80
    %s95 = sphi 0, %s81
    %s103 = sphi 0, %s105
    %s106 = sphi 0, %s103
    %s107 = sphi 0, %s106
    %s123 = sphi 0, %s107
  $region4: #{overlap_patch_embed.3} parent=0 // loop_header_branch
    %12 = sbr.rel (%p10) target = $region8
  $region5: #{overlap_patch_embed.3} parent=0 // loop_body
    %s14 = ssub.s32 %s9, 1
    %s15 = ssub.s32 %s9, 2
    %s22 = sadd.s32 1, %s17
    %p23 = scmp.ge.s32.totalorder %s22, 1
    %s24 = scalar_select %p23, 0, %s22
    %s25 = sadd.s32 1, %s16
    %s26 = scalar_select %p23, %s25, %s16
    %p27 = scmp.ge.s32.totalorder %s26, 2
    %s28 = scalar_select %p27, 0, %s26
    %s29 = ssub.s32 %s16, %s28
    %s30 = ssub.s32 %s17, %s24
    %s31 = sor.u32 %s29, %s30
    %p32 = scmp.eq.s32.totalorder %s31, 0
    %s34 = sadd.s32 %s33, 1
    %s35 = scalar_select %p32, %s33, %s34
    %p38 = pneg %p32
    %p39 = scmp.eq.s32.totalorder %s9, 1
    %p40 = por %p38, %p39
    %p41 = scmp.ne.s32.totalorder %s33, %s36
    %p42 = scmp.eq.s32.totalorder %s9, 0
    %p43 = por %p41, %p42
    %p44 = scmp.ne.s32.totalorder %s33, %s36
    %p45 = scmp.eq.s32.totalorder %s14, 1
    %p46 = por %p44, %p45
    %p47 = scmp.ne.s32.totalorder %s36, %s37
    %p48 = scmp.eq.s32.totalorder %s14, 0
    %p49 = por %p47, %p48
    %p50 = scmp.ne.s32.totalorder %s36, %s37
    %p51 = scmp.eq.s32.totalorder %s15, 1
    %p52 = por %p50, %p51
    %p54 = scmp.ne.s32.totalorder %s37, %s53
    %p55 = scmp.eq.s32.totalorder %s15, 0
    %p56 = por %p54, %p55
    %s58 = sadd.s32 %s57, 1
    %p61 = scmp.eq.s32.totalorder %s9, 1
    %p62 = scmp.ne.s32.totalorder %s57, %s59
    %p63 = scmp.eq.s32.totalorder %s9, 0
    %p64 = por %p62, %p63
    %p65 = scmp.ne.s32.totalorder %s57, %s59
    %p66 = scmp.eq.s32.totalorder %s14, 1
    %p67 = por %p65, %p66
    %p68 = scmp.ne.s32.totalorder %s59, %s60
    %p69 = scmp.eq.s32.totalorder %s14, 0
    %p70 = por %p68, %p69
    %p71 = scmp.ne.s32.totalorder %s59, %s60
    %p72 = scmp.eq.s32.totalorder %s15, 1
    %p73 = por %p71, %p72
    %p75 = scmp.ne.s32.totalorder %s60, %s74
    %p76 = scmp.eq.s32.totalorder %s15, 0
    %p77 = por %p75, %p76
    %s79 = sadd.s32 %s78, 1
    %p82 = scmp.eq.s32.totalorder %s9, 1
    %p83 = scmp.ne.s32.totalorder %s78, %s80
    %p84 = scmp.eq.s32.totalorder %s9, 0
    %p85 = por %p83, %p84
    %p86 = scmp.ne.s32.totalorder %s78, %s80
    %p87 = scmp.eq.s32.totalorder %s14, 1
    %p88 = por %p86, %p87
    %p89 = scmp.ne.s32.totalorder %s80, %s81
    %p90 = scmp.eq.s32.totalorder %s14, 0
    %p91 = por %p89, %p90
    %p92 = scmp.ne.s32.totalorder %s80, %s81
    %p93 = scmp.eq.s32.totalorder %s15, 1
    %p94 = por %p92, %p93
    %p96 = scmp.ne.s32.totalorder %s81, %s95
    %p97 = scmp.eq.s32.totalorder %s15, 0
    %p98 = por %p96, %p97
    %s99 = ssub.s32 %s16, %s28
    %s100 = ssub.s32 %s17, %s24
    %s101 = sor.u32 %s99, %s100
    %p102 = scmp.eq.s32.totalorder %s101, 0
    %s104 = sadd.s32 %s103, 1
    %s105 = scalar_select %p102, %s103, %s104
    %p108 = pneg %p102
    %p109 = scmp.eq.s32.totalorder %s9, 1
    %p110 = por %p108, %p109
    %p111 = scmp.ne.s32.totalorder %s103, %s106
    %p112 = scmp.eq.s32.totalorder %s9, 0
    %p113 = por %p111, %p112
    %p114 = scmp.ne.s32.totalorder %s103, %s106
    %p115 = scmp.eq.s32.totalorder %s14, 1
    %p116 = por %p114, %p115
    %p117 = scmp.ne.s32.totalorder %s106, %s107
    %p118 = scmp.eq.s32.totalorder %s14, 0
    %p119 = por %p117, %p118
    %p120 = scmp.ne.s32.totalorder %s106, %s107
    %p121 = scmp.eq.s32.totalorder %s15, 1
    %p122 = por %p120, %p121
    %p124 = scmp.ne.s32.totalorder %s107, %s123
    %p125 = scmp.eq.s32.totalorder %s15, 0
    %p126 = por %p124, %p125
    %p127 = scmp.le.s32.totalorder 1, %s9
    %p128 = scmp.lt.s32.totalorder %s9, 3
    %p129 = pnand %p127, %p128
    %p130 = pneg %p129
    // Predicated region
    $region9: #{overlap_patch_embed.3} parent=5 // pred_check
      _
    $region10: #{overlap_patch_embed.3} parent=5 // pred_check_branch
      %132 = sbr.rel (%p129) target = $region12
    $region11: #{overlap_patch_embed.3} parent=5 // pred_region
      %s133 = ssub.s32 %s9, 1
      // Predicated region
      $region13: #{overlap_patch_embed.3} parent=11 // pred_check
        %p134 = pneg %p70
      $region14: #{overlap_patch_embed.3} parent=11 // pred_check_branch
        %136 = sbr.rel (%p134) target = $region16
      $region15: #{overlap_patch_embed.3} parent=11 // pred_region
        _
      $region16: #{overlap_patch_embed.3} parent=11 // pred_fallthru
        _
      // Predicated region
      $region17: #{overlap_patch_embed.3} parent=11 // pred_check
        %p137 = pneg %p91
      $region18: #{overlap_patch_embed.3} parent=11 // pred_check_branch
        %139 = sbr.rel (%p137) target = $region20
      $region19: #{overlap_patch_embed.3} parent=11 // pred_region
        _
      $region20: #{overlap_patch_embed.3} parent=11 // pred_fallthru
        _
    $region12: #{overlap_patch_embed.3} parent=5 // pred_fallthru
      _
    %p140 = scmp.lt.s32.totalorder %s9, 2
    // Predicated region
    $region21: #{overlap_patch_embed.3} parent=5 // pred_check
      %p141 = pneg %p140
    $region22: #{overlap_patch_embed.3} parent=5 // pred_check_branch
      %143 = sbr.rel (%p141) target = $region24
    $region23: #{overlap_patch_embed.3} parent=5 // pred_region
      // Predicated region
      $region25: #{overlap_patch_embed.3} parent=23 // pred_check
        %p144 = pneg %p43
      $region26: #{overlap_patch_embed.3} parent=23 // pred_check_branch
        %146 = sbr.rel (%p144) target = $region28
      $region27: #{overlap_patch_embed.3} parent=23 // pred_region
        %s147 = smul.u32 16, %s17
        %p148 = scmp.lt.s32.totalorder %s16, 1
        %s149 = scalar_select %p148, %s16, 1
        %p150 = scmp.lt.s32.totalorder %s147, 15
        %s151 = scalar_select %p150, %s147, 15
        %s152 = smul.addr %s149, 16
        %s153 = sadd.s32 %s151, %s152
        %s154 = smul.addr %s153, 4
        %s155 = scalar_lea.vmem %s0, %s154
        %s156 = smul.u32 16, %s17
      $region28: #{overlap_patch_embed.3} parent=23 // pred_fallthru
        _
    $region24: #{overlap_patch_embed.3} parent=5 // pred_fallthru
      _
    %p157 = scmp.le.s32.totalorder 1, %s9
    %p158 = scmp.lt.s32.totalorder %s9, 3
    %p159 = pnand %p157, %p158
    %p160 = pneg %p159
    // Predicated region
    $region29: #{overlap_patch_embed.3} parent=5 // pred_check
      _
    $region30: #{overlap_patch_embed.3} parent=5 // pred_check_branch
      %162 = sbr.rel (%p159) target = $region32
    $region31: #{overlap_patch_embed.3} parent=5 // pred_region
      %s163 = ssub.s32 %s9, 1
      %s164 = smul.u32 16, %s19
      %p165 = scmp.lt.s32.totalorder %s18, 1
      %s166 = scalar_select %p165, %s18, 1
      %p167 = scmp.lt.s32.totalorder %s164, 15
      %s168 = scalar_select %p167, %s164, 15
      %s169 = smul.addr %s166, 16
      %s170 = sadd.s32 %s168, %s169
      %s171 = smul.addr %s170, 4
      %s172 = scalar_lea.vmem %s0, %s171
      %p173 = pneg %p49
      %p174 = pneg %p46
      %p175 = pneg %p70
      %p176 = pneg %p67
      %p177 = pneg %p91
      %p178 = pneg %p88
      %p179 = pneg %p119
      %p180 = pneg %p116
      %p181 = scmp.lt.s32.totalorder %s18, 1
      %s182 = scalar_select %p181, %s18, 1
      %p183 = scmp.lt.s32.totalorder %s19, 0
      %s184 = scalar_select %p183, %s19, 0
      %s185 = smul.addr %s182, 16
      %s186 = sadd.s32 %s184, %s185
      %s187 = smul.addr %s186, 8
      %s188 = scalar_lea.vmem %s3, %s187
      %s189 = smul.u32 16, %s19
      %p190 = scmp.lt.s32.totalorder %s18, 1
      %s191 = scalar_select %p190, %s18, 1
      %p192 = scmp.lt.s32.totalorder %s189, 15
      %s193 = scalar_select %p192, %s189, 15
      %s194 = smul.addr %s191, 16
      %s195 = sadd.s32 %s193, %s194
      %s196 = smul.addr %s195, 4
      %s197 = scalar_lea.vmem %s0, %s196
      %s198 = smul.u32 16, %s19
      %p199 = scmp.lt.s32.totalorder %s18, 1
      %s200 = scalar_select %p199, %s18, 1
      %p201 = scmp.lt.s32.totalorder %s19, 0
      %s202 = scalar_select %p201, %s19, 0
      %s203 = smul.addr %s200, 16
      %s204 = sadd.s32 %s202, %s203
      %s205 = smul.addr %s204, 8
      %s206 = scalar_lea.vmem %s3, %s205
      %v207 = vld [vmem:[%s197] sm:$0xf]
      %v208 = vld [vmem:[%s197 + $0x4] sm:$0xf]
      %v209 = vld [vmem:[%s197 + $0x8] sm:$0xf]
      %v210 = vld [vmem:[%s197 + $0xc] sm:$0xf]
      %v211 = vld [vmem:[%s197 + $0x10] sm:$0xf]
      %v212 = vld [vmem:[%s197 + $0x14] sm:$0xf]
      %v213 = vld [vmem:[%s197 + $0x18] sm:$0xf]
      %v214 = vld [vmem:[%s197 + $0x1c] sm:$0xf]
      %v215 = vld [vmem:[%s197 + $0x20] sm:$0xf]
      %v216 = vld [vmem:[%s197 + $0x24] sm:$0xf]
      %v217 = vld [vmem:[%s197 + $0x28] sm:$0xf]
      %v218 = vld [vmem:[%s197 + $0x2c] sm:$0xf]
      %v219 = vld [vmem:[%s197 + $0x30] sm:$0xf]
      %v220 = vld [vmem:[%s197 + $0x34] sm:$0xf]
      %v221 = vld [vmem:[%s197 + $0x38] sm:$0xf]
      %v222 = vld [vmem:[%s197 + $0x3c] sm:$0xf]
      %v223 = vunpack.c.l.bf16 %v207
      %v224 = vunpack.c.l.bf16 %v208
      %v225 = vunpack.c.l.bf16 %v209
      %v226 = vunpack.c.l.bf16 %v210
      %v227 = vunpack.c.l.bf16 %v211
      %v228 = vunpack.c.l.bf16 %v212
      %v229 = vunpack.c.l.bf16 %v213
      %v230 = vunpack.c.l.bf16 %v214
      %v231 = vunpack.c.l.bf16 %v215
      %v232 = vunpack.c.l.bf16 %v216
      %v233 = vunpack.c.l.bf16 %v217
      %v234 = vunpack.c.l.bf16 %v218
      %v235 = vunpack.c.l.bf16 %v219
      %v236 = vunpack.c.l.bf16 %v220
      %v237 = vunpack.c.l.bf16 %v221
      %v238 = vunpack.c.l.bf16 %v222
      %v239 = vld [vmem:[%s1] sm:$0x1]
      %v241 = vperm.slane %v239, 0
      %v243 = vmul.f32 %v223, %v241
      %v244 = vmul.f32 %v224, %v241
      %v245 = vmul.f32 %v225, %v241
      %v246 = vmul.f32 %v226, %v241
      %v247 = vmul.f32 %v227, %v241
      %v248 = vmul.f32 %v228, %v241
      %v249 = vmul.f32 %v229, %v241
      %v250 = vmul.f32 %v230, %v241
      %v251 = vmul.f32 %v231, %v241
      %v252 = vmul.f32 %v232, %v241
      %v253 = vmul.f32 %v233, %v241
      %v254 = vmul.f32 %v234, %v241
      %v255 = vmul.f32 %v235, %v241
      %v256 = vmul.f32 %v236, %v241
      %v257 = vmul.f32 %v237, %v241
      %v258 = vmul.f32 %v238, %v241
      %v259 = vld [vmem:[%s2] sm:$0x1]
      %v261 = vperm.slane %v259, 0
      %v263 = vadd.f32 %v243, %v261
      %v264 = vadd.f32 %v244, %v261
      %v265 = vadd.f32 %v245, %v261
      %v266 = vadd.f32 %v246, %v261
      %v267 = vadd.f32 %v247, %v261
      %v268 = vadd.f32 %v248, %v261
      %v269 = vadd.f32 %v249, %v261
      %v270 = vadd.f32 %v250, %v261
      %v271 = vadd.f32 %v251, %v261
      %v272 = vadd.f32 %v252, %v261
      %v273 = vadd.f32 %v253, %v261
      %v274 = vadd.f32 %v254, %v261
      %v275 = vadd.f32 %v255, %v261
      %v276 = vadd.f32 %v256, %v261
      %v277 = vadd.f32 %v257, %v261
      %v278 = vadd.f32 %v258, %v261
      %279 = vxpose.xlu0.b32.start [1/16] %v263, 128
      %280 = vxpose.xlu0.b32.cont [2/16] %v264, 128
      %281 = vxpose.xlu0.b32.cont [3/16] %v265, 128
      %282 = vxpose.xlu0.b32.cont [4/16] %v266, 128
      %283 = vxpose.xlu0.b32.cont [5/16] %v267, 128
      %284 = vxpose.xlu0.b32.cont [6/16] %v268, 128
      %285 = vxpose.xlu0.b32.cont [7/16] %v269, 128
      %286 = vxpose.xlu0.b32.cont [8/16] %v270, 128
      %287 = vxpose.xlu0.b32.cont [9/16] %v271, 128
      %288 = vxpose.xlu0.b32.cont [10/16] %v272, 128
      %289 = vxpose.xlu0.b32.cont [11/16] %v273, 128
      %290 = vxpose.xlu0.b32.cont [12/16] %v274, 128
      %291 = vxpose.xlu0.b32.cont [13/16] %v275, 128
      %292 = vxpose.xlu0.b32.cont [14/16] %v276, 128
      %293 = vxpose.xlu0.b32.cont [15/16] %v277, 128
      %294 = vxpose.xlu0.b32.end [16/16] %v278, 128
      %v295 = vpop.trf.xlu0
      %v296 = vpop.trf.xlu0
      %v297 = vpop.trf.xlu0
      %v298 = vpop.trf.xlu0
      %v299 = vpop.trf.xlu0
      %v300 = vpop.trf.xlu0
      %v301 = vpop.trf.xlu0
      %v302 = vpop.trf.xlu0
      %v303 = vpop.trf.xlu0
      %v304 = vpop.trf.xlu0
      %v305 = vpop.trf.xlu0
      %v306 = vpop.trf.xlu0
      %v307 = vpop.trf.xlu0
      %v308 = vpop.trf.xlu0
      %v309 = vpop.trf.xlu0
      %v310 = vpop.trf.xlu0
      %311 = vst [vmem:[%s206] sm:$0xff] %v295
      %312 = vst [vmem:[%s206 + $0x8] sm:$0xff] %v296
      %313 = vst [vmem:[%s206 + $0x10] sm:$0xff] %v297
      %314 = vst [vmem:[%s206 + $0x18] sm:$0xff] %v298
      %315 = vst [vmem:[%s206 + $0x20] sm:$0xff] %v299
      %316 = vst [vmem:[%s206 + $0x28] sm:$0xff] %v300
      %317 = vst [vmem:[%s206 + $0x30] sm:$0xff] %v301
      %318 = vst [vmem:[%s206 + $0x38] sm:$0xff] %v302
      %319 = vst [vmem:[%s206 + $0x40] sm:$0xff] %v303
      %320 = vst [vmem:[%s206 + $0x48] sm:$0xff] %v304
      %321 = vst [vmem:[%s206 + $0x50] sm:$0xff] %v305
      %322 = vst [vmem:[%s206 + $0x58] sm:$0xff] %v306
      %323 = vst [vmem:[%s206 + $0x60] sm:$0xff] %v307
      %324 = vst [vmem:[%s206 + $0x68] sm:$0xff] %v308
      %325 = vst [vmem:[%s206 + $0x70] sm:$0xff] %v309
      %326 = vst [vmem:[%s206 + $0x78] sm:$0xff] %v310
      %p327 = scmp.lt.s32.totalorder %s18, 1
      %s328 = scalar_select %p327, %s18, 1
      %p329 = scmp.lt.s32.totalorder %s19, 0
      %s330 = scalar_select %p329, %s19, 0
      %s331 = smul.addr %s328, 16
      %s332 = sadd.s32 %s330, %s331
      %s333 = smul.addr %s332, 8
      %s334 = scalar_lea.vmem %s3, %s333
      // Predicated region
      $region33: #{overlap_patch_embed.3} parent=31 // pred_check
        %p335 = pneg %p116
      $region34: #{overlap_patch_embed.3} parent=31 // pred_check_branch
        %337 = sbr.rel (%p335) target = $region36
      $region35: #{overlap_patch_embed.3} parent=31 // pred_region
        _
      $region36: #{overlap_patch_embed.3} parent=31 // pred_fallthru
        _
    $region32: #{overlap_patch_embed.3} parent=5 // pred_fallthru
      _
    %p338 = scmp.le.s32.totalorder 2, %s9
    // Predicated region
    $region37: #{overlap_patch_embed.3} parent=5 // pred_check
      %p339 = pneg %p338
    $region38: #{overlap_patch_embed.3} parent=5 // pred_check_branch
      %341 = sbr.rel (%p339) target = $region40
    $region39: #{overlap_patch_embed.3} parent=5 // pred_region
      %s342 = ssub.s32 %s9, 2
      // Predicated region
      $region41: #{overlap_patch_embed.3} parent=39 // pred_check
        %p343 = pneg %p122
      $region42: #{overlap_patch_embed.3} parent=39 // pred_check_branch
        %345 = sbr.rel (%p343) target = $region44
      $region43: #{overlap_patch_embed.3} parent=39 // pred_region
        %p346 = scmp.lt.s32.totalorder %s20, 1
        %s347 = scalar_select %p346, %s20, 1
        %p348 = scmp.lt.s32.totalorder %s21, 0
        %s349 = scalar_select %p348, %s21, 0
        %s350 = smul.addr %s347, 16
        %s351 = sadd.s32 %s349, %s350
        %s352 = smul.addr %s351, 8
        %s353 = scalar_lea.vmem %s3, %s352
      $region44: #{overlap_patch_embed.3} parent=39 // pred_fallthru
        _
    $region40: #{overlap_patch_embed.3} parent=5 // pred_fallthru
      _
  $region6: #{overlap_patch_embed.3} parent=0 // loop_footer
    %s13 = sadd.s32 1, %s9
  $region7: #{overlap_patch_embed.3} parent=0 // loop_footer_branch
    %8 = sbr.rel target = $region3
  $region8: #{overlap_patch_embed.3} parent=0 // loop_exit
    _

// kernel: overlap_patch_embed.2
$region0: #{overlap_patch_embed.2}
  #allocation0 [shape = 'u32[]', space=smem, size = 0x4, offset = 0x4, fixed_abs, tag = 'smem constant byte address 0x4 - core index']
  #allocation1 [shape = 'u32[72,128]{1,0:T(1,128)}', space=vmem, size = 0x9000, scoped, tag = 'internal scratch']
  #allocation2 [shape = 'f32[128,128]{1,0:T(8,128)}', space=vmem, size = 0x10000, scoped, tag = 'scratch operand']
  %s0 = inlined_call_operand.vmem [shape: bf16[2,128,196], index: 0, kind: input, shape index: {}]
  %s1 = inlined_call_operand.vmem [shape: bf16[196,128], index: 1, kind: input, shape index: {}]
  %s2 = inlined_call_operand.vmem [shape: bf16[2,128,128], index: 2, kind: output, shape index: {0}]
  %s3 = inlined_call_operand.vmem [shape: f32[2,16,128], index: 3, kind: output, shape index: {1}]
  %4 = xla_tuple %s2, %s3
  %s5 = sld [smem:[#allocation0]]
  $region57: #{overlap_patch_embed.2} parent=0
    _
  %s7 = ssub.s32 1, %s5
  %s8 = scalar_select 0, %s7, %s5
  loop: start=0, step=1, limit=4
  $region2: #{overlap_patch_embed.2} parent=0 // loop_pre_header
    _
  $region3: #{overlap_patch_embed.2} parent=0 // loop_header
    %s10 = sphi 0, %s14
    %p11 = scmp.ge.s32.totalorder %s10, 4
    %s17 = sphi 0, %s36
    %s18 = sphi 0, %s32
    %s19 = sphi 0, %s28
    %s20 = sphi 0, %s17
    %s21 = sphi 0, %s18
    %s22 = sphi 0, %s19
    %s23 = sphi 0, %s20
    %s24 = sphi 0, %s21
    %s25 = sphi 0, %s22
    %s43 = sphi 0, %s45
    %s46 = sphi 0, %s43
    %s47 = sphi 0, %s46
    %s63 = sphi 0, %s47
    %s69 = sphi 0, %s71
    %s72 = sphi 0, %s69
    %s73 = sphi 0, %s72
    %s89 = sphi 0, %s73
    %s97 = sphi 0, %s99
    %s100 = sphi 0, %s97
    %s101 = sphi 0, %s100
    %s117 = sphi 0, %s101
    %s125 = sphi 0, %s127
    %s128 = sphi 0, %s125
    %s129 = sphi 0, %s128
    %s145 = sphi 0, %s129
  $region4: #{overlap_patch_embed.2} parent=0 // loop_header_branch
    %13 = sbr.rel (%p11) target = $region8
  $region5: #{overlap_patch_embed.2} parent=0 // loop_body
    %s15 = ssub.s32 %s10, 1
    %s16 = ssub.s32 %s10, 2
    %s26 = sadd.s32 1, %s19
    %p27 = scmp.ge.s32.totalorder %s26, 1
    %s28 = scalar_select %p27, 0, %s26
    %s29 = sadd.s32 1, %s18
    %s30 = scalar_select %p27, %s29, %s18
    %p31 = scmp.ge.s32.totalorder %s30, 1
    %s32 = scalar_select %p31, 0, %s30
    %s33 = sadd.s32 1, %s17
    %s34 = scalar_select %p31, %s33, %s17
    %p35 = scmp.ge.s32.totalorder %s34, 2
    %s36 = scalar_select %p35, 0, %s34
    %s37 = ssub.s32 %s17, %s36
    %s38 = ssub.s32 %s18, %s32
    %s39 = sor.u32 %s37, %s38
    %s40 = ssub.s32 %s19, %s28
    %s41 = sor.u32 %s39, %s40
    %p42 = scmp.eq.s32.totalorder %s41, 0
    %s44 = sadd.s32 %s43, 1
    %s45 = scalar_select %p42, %s43, %s44
    %p48 = pneg %p42
    %p49 = scmp.eq.s32.totalorder %s10, 1
    %p50 = por %p48, %p49
    %p51 = scmp.ne.s32.totalorder %s43, %s46
    %p52 = scmp.eq.s32.totalorder %s10, 0
    %p53 = por %p51, %p52
    %p54 = scmp.ne.s32.totalorder %s43, %s46
    %p55 = scmp.eq.s32.totalorder %s15, 1
    %p56 = por %p54, %p55
    %p57 = scmp.ne.s32.totalorder %s46, %s47
    %p58 = scmp.eq.s32.totalorder %s15, 0
    %p59 = por %p57, %p58
    %p60 = scmp.ne.s32.totalorder %s46, %s47
    %p61 = scmp.eq.s32.totalorder %s16, 1
    %p62 = por %p60, %p61
    %p64 = scmp.ne.s32.totalorder %s47, %s63
    %p65 = scmp.eq.s32.totalorder %s16, 0
    %p66 = por %p64, %p65
    %s67 = ssub.s32 %s19, %s28
    %p68 = scmp.eq.s32.totalorder %s67, 0
    %s70 = sadd.s32 %s69, 1
    %s71 = scalar_select %p68, %s69, %s70
    %p74 = pneg %p68
    %p75 = scmp.eq.s32.totalorder %s10, 1
    %p76 = por %p74, %p75
    %p77 = scmp.ne.s32.totalorder %s69, %s72
    %p78 = scmp.eq.s32.totalorder %s10, 0
    %p79 = por %p77, %p78
    %p80 = scmp.ne.s32.totalorder %s69, %s72
    %p81 = scmp.eq.s32.totalorder %s15, 1
    %p82 = por %p80, %p81
    %p83 = scmp.ne.s32.totalorder %s72, %s73
    %p84 = scmp.eq.s32.totalorder %s15, 0
    %p85 = por %p83, %p84
    %p86 = scmp.ne.s32.totalorder %s72, %s73
    %p87 = scmp.eq.s32.totalorder %s16, 1
    %p88 = por %p86, %p87
    %p90 = scmp.ne.s32.totalorder %s73, %s89
    %p91 = scmp.eq.s32.totalorder %s16, 0
    %p92 = por %p90, %p91
    %s93 = ssub.s32 %s17, %s36
    %s94 = ssub.s32 %s18, %s32
    %s95 = sor.u32 %s93, %s94
    %p96 = scmp.eq.s32.totalorder %s95, 0
    %s98 = sadd.s32 %s97, 1
    %s99 = scalar_select %p96, %s97, %s98
    %p102 = pneg %p96
    %p103 = scmp.eq.s32.totalorder %s10, 1
    %p104 = por %p102, %p103
    %p105 = scmp.ne.s32.totalorder %s97, %s100
    %p106 = scmp.eq.s32.totalorder %s10, 0
    %p107 = por %p105, %p106
    %p108 = scmp.ne.s32.totalorder %s97, %s100
    %p109 = scmp.eq.s32.totalorder %s15, 1
    %p110 = por %p108, %p109
    %p111 = scmp.ne.s32.totalorder %s100, %s101
    %p112 = scmp.eq.s32.totalorder %s15, 0
    %p113 = por %p111, %p112
    %p114 = scmp.ne.s32.totalorder %s100, %s101
    %p115 = scmp.eq.s32.totalorder %s16, 1
    %p116 = por %p114, %p115
    %p118 = scmp.ne.s32.totalorder %s101, %s117
    %p119 = scmp.eq.s32.totalorder %s16, 0
    %p120 = por %p118, %p119
    %s121 = ssub.s32 %s17, %s36
    %s122 = ssub.s32 %s18, %s32
    %s123 = sor.u32 %s121, %s122
    %p124 = scmp.eq.s32.totalorder %s123, 0
    %s126 = sadd.s32 %s125, 1
    %s127 = scalar_select %p124, %s125, %s126
    %p130 = pneg %p124
    %p131 = scmp.eq.s32.totalorder %s10, 1
    %p132 = por %p130, %p131
    %p133 = scmp.ne.s32.totalorder %s125, %s128
    %p134 = scmp.eq.s32.totalorder %s10, 0
    %p135 = por %p133, %p134
    %p136 = scmp.ne.s32.totalorder %s125, %s128
    %p137 = scmp.eq.s32.totalorder %s15, 1
    %p138 = por %p136, %p137
    %p139 = scmp.ne.s32.totalorder %s128, %s129
    %p140 = scmp.eq.s32.totalorder %s15, 0
    %p141 = por %p139, %p140
    %p142 = scmp.ne.s32.totalorder %s128, %s129
    %p143 = scmp.eq.s32.totalorder %s16, 1
    %p144 = por %p142, %p143
    %p146 = scmp.ne.s32.totalorder %s129, %s145
    %p147 = scmp.eq.s32.totalorder %s16, 0
    %p148 = por %p146, %p147
    %p149 = scmp.le.s32.totalorder 1, %s10
    %p150 = scmp.lt.s32.totalorder %s10, 3
    %p151 = pnand %p149, %p150
    %p152 = pneg %p151
    // Predicated region
    $region9: #{overlap_patch_embed.2} parent=5 // pred_check
      _
    $region10: #{overlap_patch_embed.2} parent=5 // pred_check_branch
      %154 = sbr.rel (%p151) target = $region12
    $region11: #{overlap_patch_embed.2} parent=5 // pred_region
      %s155 = ssub.s32 %s10, 1
      // Predicated region
      $region13: #{overlap_patch_embed.2} parent=11 // pred_check
        %p156 = pneg %p85
      $region14: #{overlap_patch_embed.2} parent=11 // pred_check_branch
        %158 = sbr.rel (%p156) target = $region16
      $region15: #{overlap_patch_embed.2} parent=11 // pred_region
        %s159 = smul.u32 25, %s22
        %p160 = scmp.lt.s32.totalorder %s159, 24
        %s161 = scalar_select %p160, %s159, 24
        %s162 = smul.addr %s161, 4
        %s163 = scalar_lea.vmem %s1, %s162
        %s164 = smul.u32 25, %s22
      $region16: #{overlap_patch_embed.2} parent=11 // pred_fallthru
        _
    $region12: #{overlap_patch_embed.2} parent=5 // pred_fallthru
      _
    %p165 = scmp.lt.s32.totalorder %s10, 2
    // Predicated region
    $region17: #{overlap_patch_embed.2} parent=5 // pred_check
      %p166 = pneg %p165
    $region18: #{overlap_patch_embed.2} parent=5 // pred_check_branch
      %168 = sbr.rel (%p166) target = $region20
    $region19: #{overlap_patch_embed.2} parent=5 // pred_region
      // Predicated region
      $region21: #{overlap_patch_embed.2} parent=19 // pred_check
        %p169 = pneg %p53
      $region22: #{overlap_patch_embed.2} parent=19 // pred_check_branch
        %171 = sbr.rel (%p169) target = $region24
      $region23: #{overlap_patch_embed.2} parent=19 // pred_region
        %s172 = smul.u32 16, %s18
        %s173 = smul.u32 2, %s19
        %p174 = scmp.lt.s32.totalorder %s17, 1
        %s175 = scalar_select %p174, %s17, 1
        %p176 = scmp.lt.s32.totalorder %s172, 15
        %s177 = scalar_select %p176, %s172, 15
        %p178 = scmp.lt.s32.totalorder %s173, 1
        %s179 = scalar_select %p178, %s173, 1
        %s180 = smul.addr %s177, 2
        %s181 = sadd.s32 %s179, %s180
        %s182 = smul.addr %s175, 32
        %s183 = sadd.s32 %s181, %s182
        %s184 = smul.addr %s183, 4
        %s185 = scalar_lea.vmem %s0, %s184
        %s186 = smul.u32 16, %s18
        %s187 = smul.u32 2, %s19
      $region24: #{overlap_patch_embed.2} parent=19 // pred_fallthru
        _
    $region20: #{overlap_patch_embed.2} parent=5 // pred_fallthru
      _
    %p188 = scmp.le.s32.totalorder 1, %s10
    %p189 = scmp.lt.s32.totalorder %s10, 3
    %p190 = pnand %p188, %p189
    %p191 = pneg %p190
    // Predicated region
    $region25: #{overlap_patch_embed.2} parent=5 // pred_check
      _
    $region26: #{overlap_patch_embed.2} parent=5 // pred_check_branch
      %193 = sbr.rel (%p190) target = $region28
    $region27: #{overlap_patch_embed.2} parent=5 // pred_region
      %s194 = ssub.s32 %s10, 1
      %s195 = smul.u32 16, %s21
      %s196 = smul.u32 2, %s22
      %p197 = scmp.lt.s32.totalorder %s20, 1
      %s198 = scalar_select %p197, %s20, 1
      %p199 = scmp.lt.s32.totalorder %s195, 15
      %s200 = scalar_select %p199, %s195, 15
      %p201 = scmp.lt.s32.totalorder %s196, 1
      %s202 = scalar_select %p201, %s196, 1
      %s203 = smul.addr %s200, 2
      %s204 = sadd.s32 %s202, %s203
      %s205 = smul.addr %s198, 32
      %s206 = sadd.s32 %s204, %s205
      %s207 = smul.addr %s206, 4
      %s208 = scalar_lea.vmem %s0, %s207
      %p209 = pneg %p59
      %p210 = pneg %p56
      %s211 = smul.u32 25, %s22
      %p212 = scmp.lt.s32.totalorder %s211, 24
      %s213 = scalar_select %p212, %s211, 24
      %s214 = smul.addr %s213, 4
      %s215 = scalar_lea.vmem %s1, %s214
      %p216 = pneg %p85
      %p217 = pneg %p82
      %p218 = pneg %p113
      %p219 = pneg %p110
      %s220 = smul.u32 16, %s21
      %p221 = scmp.lt.s32.totalorder %s20, 1
      %s222 = scalar_select %p221, %s20, 1
      %p223 = scmp.lt.s32.totalorder %s220, 15
      %s224 = scalar_select %p223, %s220, 15
      %s225 = smul.addr %s222, 16
      %s226 = sadd.s32 %s224, %s225
      %s227 = smul.addr %s226, 4
      %s228 = scalar_lea.vmem %s2, %s227
      %p229 = pneg %p141
      %p230 = pneg %p138
      %s231 = smul.u32 2, %s21
      %p232 = scmp.lt.s32.totalorder %s20, 1
      %s233 = scalar_select %p232, %s20, 1
      %p234 = scmp.lt.s32.totalorder %s231, 1
      %s235 = scalar_select %p234, %s231, 1
      %s236 = smul.addr %s233, 2
      %s237 = sadd.s32 %s235, %s236
      %s238 = smul.addr %s237, 8
      %s239 = scalar_lea.vmem %s3, %s238
      %s240 = smul.u32 16, %s21
      %s241 = smul.u32 2, %s22
      %p242 = scmp.lt.s32.totalorder %s20, 1
      %s243 = scalar_select %p242, %s20, 1
      %p244 = scmp.lt.s32.totalorder %s240, 15
      %s245 = scalar_select %p244, %s240, 15
      %p246 = scmp.lt.s32.totalorder %s241, 1
      %s247 = scalar_select %p246, %s241, 1
      %s248 = smul.addr %s245, 2
      %s249 = sadd.s32 %s247, %s248
      %s250 = smul.addr %s243, 32
      %s251 = sadd.s32 %s249, %s250
      %s252 = smul.addr %s251, 4
      %s253 = scalar_lea.vmem %s0, %s252
      %s254 = smul.u32 16, %s21
      %s255 = smul.u32 2, %s22
      %s256 = smul.u32 25, %s22
      %p257 = scmp.lt.s32.totalorder %s256, 24
      %s258 = scalar_select %p257, %s256, 24
      %s259 = smul.addr %s258, 4
      %s260 = scalar_lea.vmem %s1, %s259
      %s261 = smul.u32 25, %s22
      %s262 = smul.u32 16, %s21
      %p263 = scmp.lt.s32.totalorder %s20, 1
      %s264 = scalar_select %p263, %s20, 1
      %p265 = scmp.lt.s32.totalorder %s262, 15
      %s266 = scalar_select %p265, %s262, 15
      %s267 = smul.addr %s264, 16
      %s268 = sadd.s32 %s266, %s267
      %s269 = smul.addr %s268, 4
      %s270 = scalar_lea.vmem %s2, %s269
      %s271 = smul.u32 16, %s21
      %s272 = smul.u32 2, %s21
      %p273 = scmp.lt.s32.totalorder %s20, 1
      %s274 = scalar_select %p273, %s20, 1
      %p275 = scmp.lt.s32.totalorder %s272, 1
      %s276 = scalar_select %p275, %s272, 1
      %s277 = smul.addr %s274, 2
      %s278 = sadd.s32 %s276, %s277
      %s279 = smul.addr %s278, 8
      %s280 = scalar_lea.vmem %s3, %s279
      %s281 = smul.u32 2, %s21
      %p283 = scmp.eq.s32.totalorder %s22, 0
      // Predicated region
      $region29: #{overlap_patch_embed.2} parent=27 // pred_check
        %p284 = pneg %p283
      $region30: #{overlap_patch_embed.2} parent=27 // pred_check_branch
        %286 = sbr.rel (%p284) target = $region32
      $region31: #{overlap_patch_embed.2} parent=27 // pred_region
        %287 = vst [vmem:[#allocation2] sm:$0xff] 0.0
        %288 = vst [vmem:[#allocation2 + $0x8] sm:$0xff] 0.0
        %289 = vst [vmem:[#allocation2 + $0x10] sm:$0xff] 0.0
        %290 = vst [vmem:[#allocation2 + $0x18] sm:$0xff] 0.0
        %291 = vst [vmem:[#allocation2 + $0x20] sm:$0xff] 0.0
        %292 = vst [vmem:[#allocation2 + $0x28] sm:$0xff] 0.0
        %293 = vst [vmem:[#allocation2 + $0x30] sm:$0xff] 0.0
        %294 = vst [vmem:[#allocation2 + $0x38] sm:$0xff] 0.0
        %295 = vst [vmem:[#allocation2 + $0x40] sm:$0xff] 0.0
        %296 = vst [vmem:[#allocation2 + $0x48] sm:$0xff] 0.0
        %297 = vst [vmem:[#allocation2 + $0x50] sm:$0xff] 0.0
        %298 = vst [vmem:[#allocation2 + $0x58] sm:$0xff] 0.0
        %299 = vst [vmem:[#allocation2 + $0x60] sm:$0xff] 0.0
        %300 = vst [vmem:[#allocation2 + $0x68] sm:$0xff] 0.0
        %301 = vst [vmem:[#allocation2 + $0x70] sm:$0xff] 0.0
        %302 = vst [vmem:[#allocation2 + $0x78] sm:$0xff] 0.0
      $region32: #{overlap_patch_embed.2} parent=27 // pred_fallthru
        _
      %v303 = vld [vmem:[#allocation2] sm:$0xff]
      %v304 = vld [vmem:[#allocation2 + $0x8] sm:$0xff]
      %v305 = vld [vmem:[#allocation2 + $0x10] sm:$0xff]
      %v306 = vld [vmem:[#allocation2 + $0x18] sm:$0xff]
      %v307 = vld [vmem:[#allocation2 + $0x20] sm:$0xff]
      %v308 = vld [vmem:[#allocation2 + $0x28] sm:$0xff]
      %v309 = vld [vmem:[#allocation2 + $0x30] sm:$0xff]
      %v310 = vld [vmem:[#allocation2 + $0x38] sm:$0xff]
      %v311 = vld [vmem:[#allocation2 + $0x40] sm:$0xff]
      %v312 = vld [vmem:[#allocation2 + $0x48] sm:$0xff]
      %v313 = vld [vmem:[#allocation2 + $0x50] sm:$0xff]
      %v314 = vld [vmem:[#allocation2 + $0x58] sm:$0xff]
      %v315 = vld [vmem:[#allocation2 + $0x60] sm:$0xff]
      %v316 = vld [vmem:[#allocation2 + $0x68] sm:$0xff]
      %v317 = vld [vmem:[#allocation2 + $0x70] sm:$0xff]
      %v318 = vld [vmem:[#allocation2 + $0x78] sm:$0xff]
      %v319 = vld [vmem:[%s253] sm:$0xff]
      %v320 = vld [vmem:[%s253 + $0x8] sm:$0xff]
      %v321 = vld [vmem:[%s253 + $0x10] sm:$0xff]
      %v322 = vld [vmem:[%s253 + $0x18] sm:$0xff]
      %v323 = vld [vmem:[%s253 + $0x20] sm:$0xff]
      %v324 = vld [vmem:[%s253 + $0x28] sm:$0xff]
      %v325 = vld [vmem:[%s253 + $0x30] sm:$0xff]
      %v326 = vld [vmem:[%s253 + $0x38] sm:$0xff]
      %v327 = vld [vmem:[%s253 + $0x40] sm:$0xff]
      %v328 = vld [vmem:[%s253 + $0x48] sm:$0xff]
      %v329 = vld [vmem:[%s253 + $0x50] sm:$0xff]
      %v330 = vld [vmem:[%s253 + $0x58] sm:$0xff]
      %v331 = vld [vmem:[%s253 + $0x60] sm:$0xff]
      %v332 = vld [vmem:[%s253 + $0x68] sm:$0xff]
      %v333 = vld [vmem:[%s253 + $0x70] sm:$0xff]
      %v334 = vld [vmem:[%s253 + $0x78] sm:$0xff]
      %v335 = vld [vmem:[%s260] sm:$0xf]
      %v336 = vld [vmem:[%s260 + $0x4] sm:$0xf]
      %v337 = vld [vmem:[%s260 + $0x8] sm:$0xf]
      %v338 = vld [vmem:[%s260 + $0xc] sm:$0xf]
      %v339 = vld [vmem:[%s260 + $0x10] sm:$0xf]
      %v340 = vld [vmem:[%s260 + $0x14] sm:$0xf]
      %v341 = vld [vmem:[%s260 + $0x18] sm:$0xf]
      %v342 = vld [vmem:[%s260 + $0x1c] sm:$0xf]
      %v343 = vld [vmem:[%s260 + $0x20] sm:$0xf]
      %v344 = vld [vmem:[%s260 + $0x24] sm:$0xf]
      %v345 = vld [vmem:[%s260 + $0x28] sm:$0xf]
      %v346 = vld [vmem:[%s260 + $0x2c] sm:$0xf]
      %v347 = vld [vmem:[%s260 + $0x30] sm:$0xf]
      %v348 = vld [vmem:[%s260 + $0x34] sm:$0xf]
      %v349 = vld [vmem:[%s260 + $0x38] sm:$0xf]
      %v350 = vld [vmem:[%s260 + $0x3c] sm:$0xf]
      %v351 = vld [vmem:[%s260 + $0x40] sm:$0xf]
      %v352 = vld [vmem:[%s260 + $0x44] sm:$0xf]
      %v353 = vld [vmem:[%s260 + $0x48] sm:$0xf]
      %v354 = vld [vmem:[%s260 + $0x4c] sm:$0xf]
      %v355 = vld [vmem:[%s260 + $0x50] sm:$0xf]
      %v356 = vld [vmem:[%s260 + $0x54] sm:$0xf]
      %v357 = vld [vmem:[%s260 + $0x58] sm:$0xf]
      %v358 = vld [vmem:[%s260 + $0x5c] sm:$0xf]
      %v359 = vld [vmem:[%s260 + $0x60] sm:$0x3]
      %v376 = vunpack.c.l.b16 %v319
      %v377 = vunpack.c.h.b16 %v319
      %v378 = vunpack.c.l.b16 %v320
      %v379 = vunpack.c.h.b16 %v320
      %v380 = vunpack.c.l.b16 %v321
      %v381 = vunpack.c.h.b16 %v321
      %v382 = vunpack.c.l.b16 %v322
      %v383 = vunpack.c.h.b16 %v322
      %v384 = vunpack.c.l.b16 %v323
      %v385 = vunpack.c.h.b16 %v323
      %v386 = vunpack.c.l.b16 %v324
      %v387 = vunpack.c.h.b16 %v324
      %v388 = vunpack.c.l.b16 %v325
      %v389 = vunpack.c.h.b16 %v325
      %v390 = vunpack.c.l.b16 %v326
      %v391 = vunpack.c.h.b16 %v326
      %v392 = vunpack.c.l.b16 %v327
      %v393 = vunpack.c.h.b16 %v327
      %v394 = vunpack.c.l.b16 %v328
      %v395 = vunpack.c.h.b16 %v328
      %v396 = vunpack.c.l.b16 %v329
      %v397 = vunpack.c.h.b16 %v329
      %v398 = vunpack.c.l.b16 %v330
      %v399 = vunpack.c.h.b16 %v330
      %v400 = vunpack.c.l.b16 %v331
      %v401 = vunpack.c.h.b16 %v331
      %v402 = vunpack.c.l.b16 %v332
      %v403 = vunpack.c.h.b16 %v332
      %v404 = vunpack.c.l.b16 %v333
      %v405 = vunpack.c.h.b16 %v333
      %v406 = vunpack.c.l.b16 %v334
      %v407 = vunpack.c.h.b16 %v334
      %v408 = vpack.c.b16 %v378, %v376
      %v409 = vpack.c.b16 %v379, %v377
      %v410 = vpack.c.b16 %v382, %v380
      %v411 = vpack.c.b16 %v383, %v381
      %v412 = vpack.c.b16 %v386, %v384
      %v413 = vpack.c.b16 %v387, %v385
      %v414 = vpack.c.b16 %v390, %v388
      %v415 = vpack.c.b16 %v391, %v389
      %v416 = vpack.c.b16 %v394, %v392
      %v417 = vpack.c.b16 %v395, %v393
      %v418 = vpack.c.b16 %v398, %v396
      %v419 = vpack.c.b16 %v399, %v397
      %v420 = vpack.c.b16 %v402, %v400
      %v421 = vpack.c.b16 %v403, %v401
      %v422 = vpack.c.b16 %v406, %v404
      %v423 = vpack.c.b16 %v407, %v405
      %v457 = vunpack.c.l.b16 %v335
      %v458 = vunpack.c.l.b16 %v336
      %v459 = vunpack.c.l.b16 %v337
      %v460 = vunpack.c.l.b16 %v338
      %v461 = vunpack.c.l.b16 %v339
      %v462 = vunpack.c.l.b16 %v340
      %v463 = vunpack.c.l.b16 %v341
      %v464 = vunpack.c.l.b16 %v342
      %v465 = vunpack.c.l.b16 %v343
      %v466 = vunpack.c.l.b16 %v344
      %v467 = vunpack.c.l.b16 %v345
      %v468 = vunpack.c.l.b16 %v346
      %v469 = vunpack.c.l.b16 %v347
      %v470 = vunpack.c.l.b16 %v348
      %v471 = vunpack.c.l.b16 %v349
      %v472 = vunpack.c.l.b16 %v350
      %v473 = vunpack.c.l.b16 %v351
      %v474 = vunpack.c.l.b16 %v352
      %v475 = vunpack.c.l.b16 %v353
      %v476 = vunpack.c.l.b16 %v354
      %v477 = vunpack.c.l.b16 %v355
      %v478 = vunpack.c.l.b16 %v356
      %v479 = vunpack.c.l.b16 %v357
      %v480 = vunpack.c.l.b16 %v358
      %v481 = vunpack.c.l.b16 %v359
      %v482 = vpack.c.b16 %v458, %v457
      %v483 = vpack.c.b16 %v460, %v459
      %v484 = vpack.c.b16 %v462, %v461
      %v485 = vpack.c.b16 %v464, %v463
      %v486 = vpack.c.b16 %v466, %v465
      %v487 = vpack.c.b16 %v468, %v467
      %v488 = vpack.c.b16 %v470, %v469
      %v489 = vpack.c.b16 %v472, %v471
      %v490 = vpack.c.b16 %v474, %v473
      %v491 = vpack.c.b16 %v476, %v475
      %v492 = vpack.c.b16 %v478, %v477
      %v493 = vpack.c.b16 %v480, %v479
      %v494 = vpack.c.b16 %v481, %v481
      %vm507 = vcmask 556032
      %v509 = vsel %vm507, %v409, 0
      %v512 = vsel %vm507, %v411, 0
      %v515 = vsel %vm507, %v413, 0
      %v518 = vsel %vm507, %v415, 0
      %v521 = vsel %vm507, %v417, 0
      %v524 = vsel %vm507, %v419, 0
      %v527 = vsel %vm507, %v421, 0
      %v530 = vsel %vm507, %v423, 0
      %vm532 = vcmask 1041408
      %v534 = vsel %vm532, %v494, 0
      %536 = vmatpush.bf16.msra.mxu0 %v489
      %537 = vmatpush.bf16.msra.mxu0 %v488
      %538 = vmatpush.bf16.msra.mxu0 %v487
      %539 = vmatpush.bf16.msra.mxu0 %v486
      %540 = vmatpush.bf16.msra.mxu0 %v485
      %541 = vmatpush.bf16.msra.mxu0 %v484
      %542 = vmatpush.bf16.msra.mxu0 %v483
      %543 = vmatpush.bf16.msra.mxu0 %v482
      %544 = vmatmul.bf16.gmra.mxu0 %v408
      %v545 = vpop.f32.mrf.mxu0
      %v546 = vadd.f32 0.0, %v545
      %v547 = vpop.f32.mrf.mxu0
      %v548 = vadd.f32 0.0, %v547
      %549 = vmatmul.bf16.gmra.mxu0 %v410
      %v550 = vpop.f32.mrf.mxu0
      %v551 = vadd.f32 0.0, %v550
      %v552 = vpop.f32.mrf.mxu0
      %v553 = vadd.f32 0.0, %v552
      %554 = vmatmul.bf16.gmra.mxu0 %v412
      %v555 = vpop.f32.mrf.mxu0
      %v556 = vadd.f32 0.0, %v555
      %v557 = vpop.f32.mrf.mxu0
      %v558 = vadd.f32 0.0, %v557
      %559 = vmatmul.bf16.gmra.mxu0 %v414
      %v560 = vpop.f32.mrf.mxu0
      %v561 = vadd.f32 0.0, %v560
      %v562 = vpop.f32.mrf.mxu0
      %v563 = vadd.f32 0.0, %v562
      %564 = vmatmul.bf16.gmra.mxu0 %v416
      %v565 = vpop.f32.mrf.mxu0
      %v566 = vadd.f32 0.0, %v565
      %v567 = vpop.f32.mrf.mxu0
      %v568 = vadd.f32 0.0, %v567
      %569 = vmatmul.bf16.gmra.mxu0 %v418
      %v570 = vpop.f32.mrf.mxu0
      %v571 = vadd.f32 0.0, %v570
      %v572 = vpop.f32.mrf.mxu0
      %v573 = vadd.f32 0.0, %v572
      %574 = vmatmul.bf16.gmra.mxu0 %v420
      %v575 = vpop.f32.mrf.mxu0
      %v576 = vadd.f32 0.0, %v575
      %v577 = vpop.f32.mrf.mxu0
      %v578 = vadd.f32 0.0, %v577
      %579 = vmatmul.bf16.gmra.mxu0 %v422
      %v580 = vpop.f32.mrf.mxu0
      %v581 = vadd.f32 0.0, %v580
      %v582 = vpop.f32.mrf.mxu0
      %v583 = vadd.f32 0.0, %v582
      %584 = vdwg.mxu0
      %585 = vmatpush.bf16.msra.mxu0 0
      %586 = vmatpush.bf16.msra.mxu0 0
      %587 = vmatpush.bf16.msra.mxu0 0
      %588 = vmatpush.bf16.msra.mxu0 %v534
      %589 = vmatpush.bf16.msra.mxu0 %v493
      %590 = vmatpush.bf16.msra.mxu0 %v492
      %591 = vmatpush.bf16.msra.mxu0 %v491
      %592 = vmatpush.bf16.msra.mxu0 %v490
      %593 = vmatmul.bf16.gmra.mxu0 %v509
      %v594 = vpop.f32.mrf.mxu0
      %v595 = vadd.f32 %v546, %v594
      %v596 = vpop.f32.mrf.mxu0
      %v597 = vadd.f32 %v548, %v596
      %598 = vmatmul.bf16.gmra.mxu0 %v512
      %v599 = vpop.f32.mrf.mxu0
      %v600 = vadd.f32 %v551, %v599
      %v601 = vpop.f32.mrf.mxu0
      %v602 = vadd.f32 %v553, %v601
      %603 = vmatmul.bf16.gmra.mxu0 %v515
      %v604 = vpop.f32.mrf.mxu0
      %v605 = vadd.f32 %v556, %v604
      %v606 = vpop.f32.mrf.mxu0
      %v607 = vadd.f32 %v558, %v606
      %608 = vmatmul.bf16.gmra.mxu0 %v518
      %v609 = vpop.f32.mrf.mxu0
      %v610 = vadd.f32 %v561, %v609
      %v611 = vpop.f32.mrf.mxu0
      %v612 = vadd.f32 %v563, %v611
      %613 = vmatmul.bf16.gmra.mxu0 %v521
      %v614 = vpop.f32.mrf.mxu0
      %v615 = vadd.f32 %v566, %v614
      %v616 = vpop.f32.mrf.mxu0
      %v617 = vadd.f32 %v568, %v616
      %618 = vmatmul.bf16.gmra.mxu0 %v524
      %v619 = vpop.f32.mrf.mxu0
      %v620 = vadd.f32 %v571, %v619
      %v621 = vpop.f32.mrf.mxu0
      %v622 = vadd.f32 %v573, %v621
      %623 = vmatmul.bf16.gmra.mxu0 %v527
      %v624 = vpop.f32.mrf.mxu0
      %v625 = vadd.f32 %v576, %v624
      %v626 = vpop.f32.mrf.mxu0
      %v627 = vadd.f32 %v578, %v626
      %628 = vmatmul.bf16.gmra.mxu0 %v530
      %v629 = vpop.f32.mrf.mxu0
      %v630 = vadd.f32 %v581, %v629
      %v631 = vpop.f32.mrf.mxu0
      %v632 = vadd.f32 %v583, %v631
      %633 = vdwg.mxu0
      %v634 = vadd.f32 %v303, %v595
      %v635 = vadd.f32 %v304, %v597
      %v636 = vadd.f32 %v305, %v600
      %v637 = vadd.f32 %v306, %v602
      %v638 = vadd.f32 %v307, %v605
      %v639 = vadd.f32 %v308, %v607
      %v640 = vadd.f32 %v309, %v610
      %v641 = vadd.f32 %v310, %v612
      %v642 = vadd.f32 %v311, %v615
      %v643 = vadd.f32 %v312, %v617
      %v644 = vadd.f32 %v313, %v620
      %v645 = vadd.f32 %v314, %v622
      %v646 = vadd.f32 %v315, %v625
      %v647 = vadd.f32 %v316, %v627
      %v648 = vadd.f32 %v317, %v630
      %v649 = vadd.f32 %v318, %v632
      %650 = vst [vmem:[#allocation2] sm:$0xff] %v634
      %651 = vst [vmem:[#allocation2 + $0x8] sm:$0xff] %v635
      %652 = vst [vmem:[#allocation2 + $0x10] sm:$0xff] %v636
      %653 = vst [vmem:[#allocation2 + $0x18] sm:$0xff] %v637
      %654 = vst [vmem:[#allocation2 + $0x20] sm:$0xff] %v638
      %655 = vst [vmem:[#allocation2 + $0x28] sm:$0xff] %v639
      %656 = vst [vmem:[#allocation2 + $0x30] sm:$0xff] %v640
      %657 = vst [vmem:[#allocation2 + $0x38] sm:$0xff] %v641
      %658 = vst [vmem:[#allocation2 + $0x40] sm:$0xff] %v642
      %659 = vst [vmem:[#allocation2 + $0x48] sm:$0xff] %v643
      %660 = vst [vmem:[#allocation2 + $0x50] sm:$0xff] %v644
      %661 = vst [vmem:[#allocation2 + $0x58] sm:$0xff] %v645
      %662 = vst [vmem:[#allocation2 + $0x60] sm:$0xff] %v646
      %663 = vst [vmem:[#allocation2 + $0x68] sm:$0xff] %v647
      %664 = vst [vmem:[#allocation2 + $0x70] sm:$0xff] %v648
      %665 = vst [vmem:[#allocation2 + $0x78] sm:$0xff] %v649
      // Predicated region
      $region33: #{overlap_patch_embed.2} parent=27 // pred_check
        %p666 = pneg %p283
      $region34: #{overlap_patch_embed.2} parent=27 // pred_check_branch
        %668 = sbr.rel (%p666) target = $region36
      $region35: #{overlap_patch_embed.2} parent=27 // pred_region
        %v669 = vld [vmem:[#allocation2] sm:$0xff]
        %v670 = vld [vmem:[#allocation2 + $0x8] sm:$0xff]
        %v671 = vld [vmem:[#allocation2 + $0x10] sm:$0xff]
        %v672 = vld [vmem:[#allocation2 + $0x18] sm:$0xff]
        %v673 = vld [vmem:[#allocation2 + $0x20] sm:$0xff]
        %v674 = vld [vmem:[#allocation2 + $0x28] sm:$0xff]
        %v675 = vld [vmem:[#allocation2 + $0x30] sm:$0xff]
        %v676 = vld [vmem:[#allocation2 + $0x38] sm:$0xff]
        %v677 = vld [vmem:[#allocation2 + $0x40] sm:$0xff]
        %v678 = vld [vmem:[#allocation2 + $0x48] sm:$0xff]
        %v679 = vld [vmem:[#allocation2 + $0x50] sm:$0xff]
        %v680 = vld [vmem:[#allocation2 + $0x58] sm:$0xff]
        %v681 = vld [vmem:[#allocation2 + $0x60] sm:$0xff]
        %v682 = vld [vmem:[#allocation2 + $0x68] sm:$0xff]
        %v683 = vld [vmem:[#allocation2 + $0x70] sm:$0xff]
        %v684 = vld [vmem:[#allocation2 + $0x78] sm:$0xff]
        %v685 = vpack.c.bf16 %v669, %v669
        %v686 = vpack.c.bf16 %v670, %v670
        %v687 = vpack.c.bf16 %v671, %v671
        %v688 = vpack.c.bf16 %v672, %v672
        %v689 = vpack.c.bf16 %v673, %v673
        %v690 = vpack.c.bf16 %v674, %v674
        %v691 = vpack.c.bf16 %v675, %v675
        %v692 = vpack.c.bf16 %v676, %v676
        %v693 = vpack.c.bf16 %v677, %v677
        %v694 = vpack.c.bf16 %v678, %v678
        %v695 = vpack.c.bf16 %v679, %v679
        %v696 = vpack.c.bf16 %v680, %v680
        %v697 = vpack.c.bf16 %v681, %v681
        %v698 = vpack.c.bf16 %v682, %v682
        %v699 = vpack.c.bf16 %v683, %v683
        %v700 = vpack.c.bf16 %v684, %v684
        %701 = vst [vmem:[%s270] sm:$0xf] %v685
        %702 = vst [vmem:[%s270 + $0x4] sm:$0xf] %v686
        %703 = vst [vmem:[%s270 + $0x8] sm:$0xf] %v687
        %704 = vst [vmem:[%s270 + $0xc] sm:$0xf] %v688
        %705 = vst [vmem:[%s270 + $0x10] sm:$0xf] %v689
        %706 = vst [vmem:[%s270 + $0x14] sm:$0xf] %v690
        %707 = vst [vmem:[%s270 + $0x18] sm:$0xf] %v691
        %708 = vst [vmem:[%s270 + $0x1c] sm:$0xf] %v692
        %709 = vst [vmem:[%s270 + $0x20] sm:$0xf] %v693
        %710 = vst [vmem:[%s270 + $0x24] sm:$0xf] %v694
        %711 = vst [vmem:[%s270 + $0x28] sm:$0xf] %v695
        %712 = vst [vmem:[%s270 + $0x2c] sm:$0xf] %v696
        %713 = vst [vmem:[%s270 + $0x30] sm:$0xf] %v697
        %714 = vst [vmem:[%s270 + $0x34] sm:$0xf] %v698
        %715 = vst [vmem:[%s270 + $0x38] sm:$0xf] %v699
        %716 = vst [vmem:[%s270 + $0x3c] sm:$0xf] %v700
        %s717 = smul.u32 %s21, 128
        %v718 = vlaneseq
        %v719 = vshrl.u32 %v718, 7
        %v720 = vadd.s32 %v719, 8
        %v721 = vadd.s32 %v719, 16
        %v722 = vadd.s32 %v719, 24
        %v723 = vadd.s32 %v719, 32
        %v724 = vadd.s32 %v719, 40
        %v725 = vadd.s32 %v719, 48
        %v726 = vadd.s32 %v719, 56
        %v727 = vadd.s32 %v719, 64
        %v728 = vadd.s32 %v719, 72
        %v729 = vadd.s32 %v719, 80
        %v730 = vadd.s32 %v719, 88
        %v731 = vadd.s32 %v719, 96
        %v732 = vadd.s32 %v719, 104
        %v733 = vadd.s32 %v719, 112
        %v734 = vadd.s32 %v719, 120
        %v735 = vstv %s717
        %v736 = vadd.s32 %v735, %v719
        %v737 = vadd.s32 %v735, %v720
        %v738 = vadd.s32 %v735, %v721
        %v739 = vadd.s32 %v735, %v722
        %v740 = vadd.s32 %v735, %v723
        %v741 = vadd.s32 %v735, %v724
        %v742 = vadd.s32 %v735, %v725
        %v743 = vadd.s32 %v735, %v726
        %v744 = vadd.s32 %v735, %v727
        %v745 = vadd.s32 %v735, %v728
        %v746 = vadd.s32 %v735, %v729
        %v747 = vadd.s32 %v735, %v730
        %v748 = vadd.s32 %v735, %v731
        %v749 = vadd.s32 %v735, %v732
        %v750 = vadd.s32 %v735, %v733
        %v751 = vadd.s32 %v735, %v734
        %vm752 = vcmp.lt.s32.totalorder %v736, 16
        %vm753 = vcmp.lt.s32.totalorder %v737, 16
        %vm754 = vcmp.lt.s32.totalorder %v738, 16
        %vm755 = vcmp.lt.s32.totalorder %v739, 16
        %vm756 = vcmp.lt.s32.totalorder %v740, 16
        %vm757 = vcmp.lt.s32.totalorder %v741, 16
        %vm758 = vcmp.lt.s32.totalorder %v742, 16
        %vm759 = vcmp.lt.s32.totalorder %v743, 16
        %vm760 = vcmp.lt.s32.totalorder %v744, 16
        %vm761 = vcmp.lt.s32.totalorder %v745, 16
        %vm762 = vcmp.lt.s32.totalorder %v746, 16
        %vm763 = vcmp.lt.s32.totalorder %v747, 16
        %vm764 = vcmp.lt.s32.totalorder %v748, 16
        %vm765 = vcmp.lt.s32.totalorder %v749, 16
        %vm766 = vcmp.lt.s32.totalorder %v750, 16
        %vm767 = vcmp.lt.s32.totalorder %v751, 16
        %v768 = vsel %vm752, %v669, 0.0
        %v769 = vsel %vm753, %v670, 0.0
        %v770 = vsel %vm754, %v671, 0.0
        %v771 = vsel %vm755, %v672, 0.0
        %v772 = vsel %vm756, %v673, 0.0
        %v773 = vsel %vm757, %v674, 0.0
        %v774 = vsel %vm758, %v675, 0.0
        %v775 = vsel %vm759, %v676, 0.0
        %v776 = vsel %vm760, %v677, 0.0
        %v777 = vsel %vm761, %v678, 0.0
        %v778 = vsel %vm762, %v679, 0.0
        %v779 = vsel %vm763, %v680, 0.0
        %v780 = vsel %vm764, %v681, 0.0
        %v781 = vsel %vm765, %v682, 0.0
        %v782 = vsel %vm766, %v683, 0.0
        %v783 = vsel %vm767, %v684, 0.0
        %v784 = vadd.f32 %v768, %v769
        %v785 = vadd.f32 %v784, %v770
        %v786 = vadd.f32 %v785, %v771
        %v787 = vadd.f32 %v786, %v772
        %v788 = vadd.f32 %v787, %v773
        %v789 = vadd.f32 %v788, %v774
        %v790 = vadd.f32 %v789, %v775
        %v791 = vadd.f32 %v790, %v776
        %v792 = vadd.f32 %v791, %v777
        %v793 = vadd.f32 %v792, %v778
        %v794 = vadd.f32 %v793, %v779
        %v795 = vadd.f32 %v794, %v780
        %v796 = vadd.f32 %v795, %v781
        %v797 = vadd.f32 %v796, %v782
        %v798 = vadd.f32 %v797, %v783
        %v799 = vrot.slane %v798, 4
        %v800 = vadd.f32 %v798, %v799
        %v801 = vrot.slane %v800, 2
        %v802 = vadd.f32 %v800, %v801
        %v803 = vrot.slane %v802, 1
        %v804 = vadd.f32 %v802, %v803
        %v805 = vmul.f32 %v768, %v768
        %v806 = vmul.f32 %v769, %v769
        %v807 = vmul.f32 %v770, %v770
        %v808 = vmul.f32 %v771, %v771
        %v809 = vmul.f32 %v772, %v772
        %v810 = vmul.f32 %v773, %v773
        %v811 = vmul.f32 %v774, %v774
        %v812 = vmul.f32 %v775, %v775
        %v813 = vmul.f32 %v776, %v776
        %v814 = vmul.f32 %v777, %v777
        %v815 = vmul.f32 %v778, %v778
        %v816 = vmul.f32 %v779, %v779
        %v817 = vmul.f32 %v780, %v780
        %v818 = vmul.f32 %v781, %v781
        %v819 = vmul.f32 %v782, %v782
        %v820 = vmul.f32 %v783, %v783
        %v821 = vadd.f32 %v805, %v806
        %v822 = vadd.f32 %v821, %v807
        %v823 = vadd.f32 %v822, %v808
        %v824 = vadd.f32 %v823, %v809
        %v825 = vadd.f32 %v824, %v810
        %v826 = vadd.f32 %v825, %v811
        %v827 = vadd.f32 %v826, %v812
        %v828 = vadd.f32 %v827, %v813
        %v829 = vadd.f32 %v828, %v814
        %v830 = vadd.f32 %v829, %v815
        %v831 = vadd.f32 %v830, %v816
        %v832 = vadd.f32 %v831, %v817
        %v833 = vadd.f32 %v832, %v818
        %v834 = vadd.f32 %v833, %v819
        %v835 = vadd.f32 %v834, %v820
        %v836 = vrot.slane %v835, 4
        %v837 = vadd.f32 %v835, %v836
        %v838 = vrot.slane %v837, 2
        %v839 = vadd.f32 %v837, %v838
        %v840 = vrot.slane %v839, 1
        %v841 = vadd.f32 %v839, %v840
        %vm842 = vcmp.lt.s32.totalorder %v719, 8
        %vm843 = vcmp.lt.s32.totalorder %v720, 8
        %v844 = vsel %vm842, %v804, %v841
        %v845 = vsel %vm843, %v804, %v841
        %846 = vst [vmem:[%s280] sm:$0xff] %v844
        %847 = vst [vmem:[%s280 + $0x8] sm:$0xff] %v845
      $region36: #{overlap_patch_embed.2} parent=27 // pred_fallthru
        _
      %s848 = smul.u32 16, %s21
      %p849 = scmp.lt.s32.totalorder %s20, 1
      %s850 = scalar_select %p849, %s20, 1
      %p851 = scmp.lt.s32.totalorder %s848, 15
      %s852 = scalar_select %p851, %s848, 15
      %s853 = smul.addr %s850, 16
      %s854 = sadd.s32 %s852, %s853
      %s855 = smul.addr %s854, 4
      %s856 = scalar_lea.vmem %s2, %s855
      %s857 = smul.u32 2, %s21
      %p858 = scmp.lt.s32.totalorder %s20, 1
      %s859 = scalar_select %p858, %s20, 1
      %p860 = scmp.lt.s32.totalorder %s857, 1
      %s861 = scalar_select %p860, %s857, 1
      %s862 = smul.addr %s859, 2
      %s863 = sadd.s32 %s861, %s862
      %s864 = smul.addr %s863, 8
      %s865 = scalar_lea.vmem %s3, %s864
      // Predicated region
      $region37: #{overlap_patch_embed.2} parent=27 // pred_check
        %p866 = pneg %p110
      $region38: #{overlap_patch_embed.2} parent=27 // pred_check_branch
        %868 = sbr.rel (%p866) target = $region40
      $region39: #{overlap_patch_embed.2} parent=27 // pred_region
        %s869 = smul.u32 16, %s21
      $region40: #{overlap_patch_embed.2} parent=27 // pred_fallthru
        _
      // Predicated region
      $region41: #{overlap_patch_embed.2} parent=27 // pred_check
        %p870 = pneg %p138
      $region42: #{overlap_patch_embed.2} parent=27 // pred_check_branch
        %872 = sbr.rel (%p870) target = $region44
      $region43: #{overlap_patch_embed.2} parent=27 // pred_region
        %s873 = smul.u32 2, %s21
      $region44: #{overlap_patch_embed.2} parent=27 // pred_fallthru
        _
    $region28: #{overlap_patch_embed.2} parent=5 // pred_fallthru
      _
    %p874 = scmp.le.s32.totalorder 2, %s10
    // Predicated region
    $region45: #{overlap_patch_embed.2} parent=5 // pred_check
      %p875 = pneg %p874
    $region46: #{overlap_patch_embed.2} parent=5 // pred_check_branch
      %877 = sbr.rel (%p875) target = $region48
    $region47: #{overlap_patch_embed.2} parent=5 // pred_region
      %s878 = ssub.s32 %s10, 2
      // Predicated region
      $region49: #{overlap_patch_embed.2} parent=47 // pred_check
        %p879 = pneg %p116
      $region50: #{overlap_patch_embed.2} parent=47 // pred_check_branch
        %881 = sbr.rel (%p879) target = $region52
      $region51: #{overlap_patch_embed.2} parent=47 // pred_region
        %s882 = smul.u32 16, %s24
        %p883 = scmp.lt.s32.totalorder %s23, 1
        %s884 = scalar_select %p883, %s23, 1
        %p885 = scmp.lt.s32.totalorder %s882, 15
        %s886 = scalar_select %p885, %s882, 15
        %s887 = smul.addr %s884, 16
        %s888 = sadd.s32 %s886, %s887
        %s889 = smul.addr %s888, 4
        %s890 = scalar_lea.vmem %s2, %s889
      $region52: #{overlap_patch_embed.2} parent=47 // pred_fallthru
        _
      // Predicated region
      $region53: #{overlap_patch_embed.2} parent=47 // pred_check
        %p891 = pneg %p144
      $region54: #{overlap_patch_embed.2} parent=47 // pred_check_branch
        %893 = sbr.rel (%p891) target = $region56
      $region55: #{overlap_patch_embed.2} parent=47 // pred_region
        %s894 = smul.u32 2, %s24
        %p895 = scmp.lt.s32.totalorder %s23, 1
        %s896 = scalar_select %p895, %s23, 1
        %p897 = scmp.lt.s32.totalorder %s894, 1
        %s898 = scalar_select %p897, %s894, 1
        %s899 = smul.addr %s896, 2
        %s900 = sadd.s32 %s898, %s899
        %s901 = smul.addr %s900, 8
        %s902 = scalar_lea.vmem %s3, %s901
      $region56: #{overlap_patch_embed.2} parent=47 // pred_fallthru
        _
    $region48: #{overlap_patch_embed.2} parent=5 // pred_fallthru
      _
  $region6: #{overlap_patch_embed.2} parent=0 // loop_footer
    %s14 = sadd.s32 1, %s10
  $region7: #{overlap_patch_embed.2} parent=0 // loop_footer_branch
    %9 = sbr.rel target = $region3
  $region8: #{overlap_patch_embed.2} parent=0 // loop_exit
    _

</llo_original>
